<compile_context>
chip_gen: v7x
topology: tpu7x:2x2x1
jax: 0.10.0
libtpu: 0.0.40
codegen_flags: <defaults>
</compile_context>

<pallas_src>
import functools

import jax
import jax.numpy as jnp
from jax.experimental import pallas as pl
from jax.experimental.pallas import tpu as pltpu  # noqa: F401  (TPU backend)

# ---------------------------------------------------------------------------
# Model configuration (small synthetic shapes).
# ---------------------------------------------------------------------------
B = 2                # batch
IMG = 32             # H = W
IN_CH = 3            # RGB input
IN_CH_PAD = 8        # channel padding for clean sublane tiles
FEAT_CH = 32         # feature channels after the stem conv
NUM_CLASSES = 4
HEAD_OUT = NUM_CLASSES + 4       # merged cls+reg head output channels
STRIDES = (8, 16, 32)            # -> feature maps 4x4, 2x2, 1x1
MAX_DET = 16
SCORE_THR = 0.4


# ---------------------------------------------------------------------------
# Fused Pallas kernel: stacked stem matmul -> block-diagonal merged head
# matmul -> per-lane level select -> sigmoid -> class max/argmax ->
# distance2bbox decode -> single full-width output store.
#
# Layout (lane-dense): channels on sublanes; lanes are level-major with batch
# inside each level:  lane = B*level_offset + b*cnt_level + (y*wf + x).
# ---------------------------------------------------------------------------
def _fused_kernel(x_ref, meta_ref, sw_ref, sb_ref, hw_ref, hb_ref, o_ref, *,
                  num_classes, n_lvl, img_h, img_w, lane_bounds):
    # x_ref:    (IN_CH_PAD, N) bf16   all levels & images
    # meta_ref: (8, N) f32            rows 0..2 = prior x, prior y, stride
    # sw_ref:   (n_lvl*FEAT, IN_CH_PAD) bf16   stacked per-level stem weights
    # sb_ref:   (n_lvl*FEAT, 1) f32
    # hw_ref:   (n_lvl*(K+4), n_lvl*FEAT) bf16 block-diagonal merged head
    # hb_ref:   (n_lvl*(K+4), 1) f32
    # o_ref:    (8, N) f32            rows 0..5 = x1,y1,x2,y2,score,label
    ko = num_classes + 4

    x = x_ref[...]                                           # (Cin, N) bf16

    # Fused stem: every level's 1x1 stem applied to every lane in ONE matmul.
    feat = jnp.dot(sw_ref[...], x, preferred_element_type=jnp.float32)
    feat = jnp.maximum(feat + sb_ref[...], 0.0)              # (n_lvl*FEAT, N)

    # Fused merged cls+reg head: block-diagonal weight, ONE matmul.
    head_all = jnp.dot(hw_ref[...], feat.astype(jnp.bfloat16),
                       preferred_element_type=jnp.float32)
    head_all = head_all + hb_ref[...]                        # (n_lvl*(K+4), N)

    # Per-lane select of the owning level's (K+4) row block.  Lanes are
    # level-major, so level membership is a static lane-range comparison.
    lane = jax.lax.broadcasted_iota(jnp.int32, (1, x.shape[1]), 1)
    head = head_all[0:ko]
    for l in range(1, n_lvl):
        head = jnp.where(lane >= lane_bounds[l],
                         head_all[l * ko:(l + 1) * ko], head)

    cls = head[:num_classes]                                 # (K, N)
    # RTMDetSepBNHead applies F.relu to the regression distances before
    # distance2bbox (distance2bbox itself only clamps decoded coords).
    reg = jnp.maximum(head[num_classes:], 0.0)               # (4, N)

    # Exact sigmoid: exp + full-precision reciprocal, both on the EUP slot.
    scores = pl.reciprocal(1.0 + jnp.exp(-cls), approx=False)

    # Per-anchor class max + first-index argmax, unrolled over the K class
    # rows (classes on sublanes -> pure VPU).  K=4 here; at real K=80 use a
    # sublane-axis max/argmax reduce (XLU) instead.
    max_s = scores[0:1]
    for c in range(1, num_classes):
        max_s = jnp.maximum(max_s, scores[c:c + 1])
    label = jnp.full_like(max_s, float(num_classes - 1))
    for c in range(num_classes - 2, -1, -1):
        label = jnp.where(scores[c:c + 1] == max_s, float(c), label)

    # distance2bbox with precomputed per-lane prior / stride, coords clamped
    # to (0, w) / (0, h) exactly as mmdet's distance2bbox(max_shape=(h, w)).
    px = meta_ref[0:1, :]
    py = meta_ref[1:2, :]
    st = meta_ref[2:3, :]
    x1 = jnp.clip(px - reg[0:1] * st, 0.0, float(img_w))
    y1 = jnp.clip(py - reg[1:2] * st, 0.0, float(img_h))
    x2 = jnp.clip(px + reg[2:3] * st, 0.0, float(img_w))
    y2 = jnp.clip(py + reg[3:4] * st, 0.0, float(img_h))

    zero = jnp.zeros_like(max_s)
    # ONE full-width, full-8-sublane unmasked store of the whole output slab.
    o_ref[...] = jnp.concatenate(
        [x1, y1, x2, y2, max_s, label, zero, zero], axis=0)


# ---------------------------------------------------------------------------
# Deterministic synthetic parameters (replaces the external `det` weights).
# Stored per level in kernel-friendly channel-first layout, cls/reg merged.
# ---------------------------------------------------------------------------
def init_params(key):
    sw, sb, hw, hb = [], [], [], []
    for _ in STRIDES:
        key, k1, k2, k3 = jax.random.split(key, 4)
        sw.append(jax.random.normal(k1, (FEAT_CH, IN_CH_PAD), jnp.float32) * 0.5)
        sb.append(jnp.zeros((FEAT_CH, 1), jnp.float32))
        cls_w = jax.random.normal(k2, (NUM_CLASSES, FEAT_CH), jnp.float32) * 0.5
        reg_w = jax.random.normal(k3, (4, FEAT_CH), jnp.float32) * 0.5
        hw.append(jnp.concatenate([cls_w, reg_w], axis=0))          # (K+4, FEAT)
        hb.append(jnp.concatenate([jnp.zeros((NUM_CLASSES, 1), jnp.float32),
                                   0.5 * jnp.ones((4, 1), jnp.float32)], axis=0))
    return {"stem_w": jnp.stack(sw), "stem_b": jnp.stack(sb),
            "head_w": jnp.stack(hw), "head_b": jnp.stack(hb)}


# ---------------------------------------------------------------------------
# Forward pass.
# ---------------------------------------------------------------------------
def rtmdet_onnx_forward(params, x):
    """x: (B, 3, H, W) float32 NCHW.  Returns (B, MAX_DET, 6)."""
    b, _, h, w = x.shape
    level_dims = tuple((h // s, w // s, s) for s in STRIDES)
    n_lvl = len(level_dims)
    cnts = [hf * wf for hf, wf, _ in level_dims]
    n_per_img = sum(cnts)
    n_total = b * n_per_img
    out_lanes = max(128, pl.cdiv(n_total, 128) * 128)

    # Synthetic backbone/neck: successive average pools, channels-first so the
    # kernel sees lane-dense (Cin, positions) rows.
    # TODO(synk): the real backbone/neck/conv-head weights live in an external
    # mmdet checkpoint; this pooled pyramid + synthetic weights stands in.
    # TODO(synk): at real input sizes fold this pooling into the kernel so the
    # image crosses HBM only once.
    x_cf = jnp.pad(jnp.transpose(x, (1, 0, 2, 3)),
                   ((0, IN_CH_PAD - IN_CH), (0, 0), (0, 0), (0, 0)))
    s0 = STRIDES[0]
    p = x_cf.reshape(IN_CH_PAD, b, h // s0, s0, w // s0, s0).mean(axis=(3, 5))
    level_inputs = [p.reshape(IN_CH_PAD, b * cnts[0])]
    for li, (prev_s, s) in enumerate(zip(STRIDES[:-1], STRIDES[1:]), start=1):
        r = s // prev_s
        hf, wf, _ = level_dims[li]
        p = p.reshape(IN_CH_PAD, b, hf, r, wf, r).mean(axis=(3, 5))
        level_inputs.append(p.reshape(IN_CH_PAD, b * hf * wf))

    # Level-major lane layout (batch inside each level): concatenation along
    # lanes IS the kernel layout -> every level is a contiguous lane range.
    x_all = jnp.concatenate(level_inputs, axis=1)                 # (Cin, Ntot)
    x_all = jnp.pad(x_all, ((0, 0), (0, out_lanes - n_total)))
    x_all = x_all.astype(jnp.bfloat16)                            # MXU operand

    # Precomputed per-lane priors + stride (constant-folded under jit).
    px_rows, py_rows, st_rows = [], [], []
    for (hf, wf, stride) in level_dims:
        ys = jnp.repeat(jnp.arange(hf, dtype=jnp.float32), wf)
        xs = jnp.tile(jnp.arange(wf, dtype=jnp.float32), hf)
        px_rows.append(jnp.tile(xs * float(stride), b))
        py_rows.append(jnp.tile(ys * float(stride), b))
        st_rows.append(jnp.full((b * hf * wf,), float(stride), jnp.float32))
    meta = jnp.zeros((8, out_lanes), jnp.float32)
    meta = meta.at[0, :n_total].set(jnp.concatenate(px_rows))
    meta = meta.at[1, :n_total].set(jnp.concatenate(py_rows))
    meta = meta.at[2, :n_total].set(jnp.concatenate(st_rows))

    # Fused weights: stacked stem (3*FEAT, Cin) and block-diagonal merged
    # cls+reg head (3*(K+4), 3*FEAT), bf16 operands, f32 biases.
    sw = params["stem_w"].reshape(n_lvl * FEAT_CH, IN_CH_PAD).astype(jnp.bfloat16)
    sb = params["stem_b"].reshape(n_lvl * FEAT_CH, 1)
    hw_bd = jnp.zeros((n_lvl * HEAD_OUT, n_lvl * FEAT_CH), jnp.float32)
    for l in range(n_lvl):
        hw_bd = hw_bd.at[l * HEAD_OUT:(l + 1) * HEAD_OUT,
                         l * FEAT_CH:(l + 1) * FEAT_CH].set(params["head_w"][l])
    hw_bd = hw_bd.astype(jnp.bfloat16)
    hb = params["head_b"].reshape(n_lvl * HEAD_OUT, 1)

    # Static lane offset where each level starts (for the in-kernel select).
    lane_bounds, off = [], 0
    for c in cnts:
        lane_bounds.append(b * off)
        off += c
    lane_bounds = tuple(lane_bounds)

    kernel = functools.partial(
        _fused_kernel, num_classes=NUM_CLASSES, n_lvl=n_lvl,
        img_h=h, img_w=w, lane_bounds=lane_bounds)

    # One fused, gridless Pallas call for the whole head + decode; every
    # operand is a full-array VMEM block (total live data is a few KB).
    slab = pl.pallas_call(
        kernel,
        out_shape=jax.ShapeDtypeStruct((8, out_lanes), jnp.float32),
    )(x_all, meta, sw, sb, hw_bd, hb)

    # ---- regroup lanes per image, top-MAX_DET, threshold, pad (plain JAX) --
    # TODO(synk): per-image descending sort / top-k has no clean single Pallas
    # TPU primitive at this layout; lax.top_k replaces argsort + gather.
    segs, off = [], 0
    for cnt in cnts:
        seg = slab[0:6, b * off: b * off + b * cnt].reshape(6, b, cnt)
        segs.append(seg)
        off += cnt
    det = jnp.concatenate(segs, axis=2).transpose(1, 2, 0)        # (B, N, 6)
    scores = det[:, :, 4]
    k = min(MAX_DET, n_per_img)
    _, top_i = jax.lax.top_k(scores, k)                           # descending
    out = jnp.take_along_axis(det, top_i[:, :, None], axis=1)     # (B, k, 6)
    keep = (out[:, :, 4] >= SCORE_THR)[..., None]
    out = jnp.where(keep, out, 0.0)
    if k < MAX_DET:
        out = jnp.concatenate(
            [out, jnp.zeros((b, MAX_DET - k, 6), jnp.float32)], axis=1)
    return out                                                    # (B, MAX_DET, 6)


# ---------------------------------------------------------------------------
if __name__ == "__main__":
    key = jax.random.PRNGKey(0)
    pkey, xkey = jax.random.split(key)
    params = init_params(pkey)
    x = jax.random.normal(xkey, (B, IN_CH, IMG, IMG), jnp.float32)

    out = jax.jit(functools.partial(rtmdet_onnx_forward, params))(x)
    out = jax.block_until_ready(out)

    assert out.shape == (B, MAX_DET, 6), out.shape
    assert out.dtype == jnp.float32
    print("KERNEL_OK")
</pallas_src>

<mosaic_0001>
module attributes {stable_mosaic.version = 11 : i64} {
  func.func @_fused_kernel(%arg0: memref<8x128xbf16, #tpu.memory_space<vmem>>, %arg1: memref<8x128xf32, #tpu.memory_space<vmem>>, %arg2: memref<96x8xbf16, #tpu.memory_space<vmem>>, %arg3: memref<96x1xf32, #tpu.memory_space<vmem>>, %arg4: memref<24x96xbf16, #tpu.memory_space<vmem>>, %arg5: memref<24x1xf32, #tpu.memory_space<vmem>>, %arg6: memref<8x128xf32, #tpu.memory_space<vmem>>) attributes {dimension_semantics = [], scalar_prefetch = 0 : i64, scratch_operands = 0 : i64, tpu.core_type = #tpu.core_type<tc>} {
    %c0 = arith.constant 0 : index
    %c0_0 = arith.constant 0 : index
    %0 = vector.load %arg0[%c0, %c0_0] : memref<8x128xbf16, #tpu.memory_space<vmem>>, vector<8x128xbf16>
    %c0_1 = arith.constant 0 : index
    %c0_2 = arith.constant 0 : index
    %1 = vector.load %arg2[%c0_1, %c0_2] : memref<96x8xbf16, #tpu.memory_space<vmem>>, vector<96x8xbf16>
    %cst = arith.constant dense<0.000000e+00> : vector<96x128xf32>
    %2 = tpu.matmul %1, %0, %cst {dimension_numbers = #tpu.dot_dimension_numbers<[1], [0], [0], [1], [0, 0, 1, 1], [], []>} : vector<96x8xbf16>, vector<8x128xbf16>, vector<96x128xf32> -> vector<96x128xf32>
    %c0_3 = arith.constant 0 : index
    %c0_4 = arith.constant 0 : index
    %3 = vector.load %arg3[%c0_3, %c0_4] : memref<96x1xf32, #tpu.memory_space<vmem>>, vector<96x1xf32>
    %4 = vector.broadcast %3 : vector<96x1xf32> to vector<96x128xf32>
    %5 = arith.addf %2, %4 : vector<96x128xf32>
    %cst_5 = arith.constant 0.000000e+00 : f32
    %6 = vector.broadcast %cst_5 : f32 to vector<96x128xf32>
    %7 = arith.maximumf %5, %6 : vector<96x128xf32>
    %c0_6 = arith.constant 0 : index
    %c0_7 = arith.constant 0 : index
    %8 = vector.load %arg4[%c0_6, %c0_7] : memref<24x96xbf16, #tpu.memory_space<vmem>>, vector<24x96xbf16>
    %9 = arith.truncf %7 : vector<96x128xf32> to vector<96x128xbf16>
    %cst_8 = arith.constant dense<0.000000e+00> : vector<24x128xf32>
    %10 = tpu.matmul %8, %9, %cst_8 {dimension_numbers = #tpu.dot_dimension_numbers<[1], [0], [0], [1], [0, 0, 1, 1], [], []>} : vector<24x96xbf16>, vector<96x128xbf16>, vector<24x128xf32> -> vector<24x128xf32>
    %c0_9 = arith.constant 0 : index
    %c0_10 = arith.constant 0 : index
    %11 = vector.load %arg5[%c0_9, %c0_10] : memref<24x1xf32, #tpu.memory_space<vmem>>, vector<24x1xf32>
    %12 = vector.broadcast %11 : vector<24x1xf32> to vector<24x128xf32>
    %13 = arith.addf %10, %12 : vector<24x128xf32>
    %14 = tpu.iota {dimensions = array<i32: 1>} : vector<1x128xi32>
    %15 = vector.extract_strided_slice %13 {offsets = [0, 0], sizes = [8, 128], strides = [1, 1]} : vector<24x128xf32> to vector<8x128xf32>
    %c32_i32 = arith.constant 32 : i32
    %16 = vector.broadcast %c32_i32 : i32 to vector<1x128xi32>
    %17 = arith.cmpi sge, %14, %16 : vector<1x128xi32>
    %18 = vector.extract_strided_slice %13 {offsets = [8, 0], sizes = [8, 128], strides = [1, 1]} : vector<24x128xf32> to vector<8x128xf32>
    %19 = vector.shape_cast %17 : vector<1x128xi1> to vector<1x128xi1>
    %20 = vector.broadcast %19 : vector<1x128xi1> to vector<8x128xi1>
    %21 = arith.select %20, %18, %15 : vector<8x128xi1>, vector<8x128xf32>
    %c40_i32 = arith.constant 40 : i32
    %22 = vector.broadcast %c40_i32 : i32 to vector<1x128xi32>
    %23 = arith.cmpi sge, %14, %22 : vector<1x128xi32>
    %24 = vector.extract_strided_slice %13 {offsets = [16, 0], sizes = [8, 128], strides = [1, 1]} : vector<24x128xf32> to vector<8x128xf32>
    %25 = vector.shape_cast %23 : vector<1x128xi1> to vector<1x128xi1>
    %26 = vector.broadcast %25 : vector<1x128xi1> to vector<8x128xi1>
    %27 = arith.select %26, %24, %21 : vector<8x128xi1>, vector<8x128xf32>
    %28 = vector.extract_strided_slice %27 {offsets = [0, 0], sizes = [4, 128], strides = [1, 1]} : vector<8x128xf32> to vector<4x128xf32>
    %29 = vector.extract_strided_slice %27 {offsets = [4, 0], sizes = [4, 128], strides = [1, 1]} : vector<8x128xf32> to vector<4x128xf32>
    %cst_11 = arith.constant 0.000000e+00 : f32
    %30 = vector.broadcast %cst_11 : f32 to vector<4x128xf32>
    %31 = arith.maximumf %29, %30 : vector<4x128xf32>
    %cst_12 = arith.constant 0.000000e+00 : f32
    %32 = vector.broadcast %cst_12 : f32 to vector<4x128xf32>
    %33 = arith.subf %32, %28 : vector<4x128xf32>
    %34 = math.exp %33 : vector<4x128xf32>
    %cst_13 = arith.constant 1.000000e+00 : f32
    %35 = vector.broadcast %cst_13 : f32 to vector<4x128xf32>
    %36 = arith.addf %35, %34 : vector<4x128xf32>
    %37 = tpu.reciprocal %36 : vector<4x128xf32> -> vector<4x128xf32>
    %38 = vector.extract_strided_slice %37 {offsets = [0, 0], sizes = [1, 128], strides = [1, 1]} : vector<4x128xf32> to vector<1x128xf32>
    %39 = vector.extract_strided_slice %37 {offsets = [1, 0], sizes = [1, 128], strides = [1, 1]} : vector<4x128xf32> to vector<1x128xf32>
    %40 = arith.maximumf %38, %39 : vector<1x128xf32>
    %41 = vector.extract_strided_slice %37 {offsets = [2, 0], sizes = [1, 128], strides = [1, 1]} : vector<4x128xf32> to vector<1x128xf32>
    %42 = arith.maximumf %40, %41 : vector<1x128xf32>
    %43 = vector.extract_strided_slice %37 {offsets = [3, 0], sizes = [1, 128], strides = [1, 1]} : vector<4x128xf32> to vector<1x128xf32>
    %44 = arith.maximumf %42, %43 : vector<1x128xf32>
    %cst_14 = arith.constant 3.000000e+00 : f32
    %45 = vector.broadcast %cst_14 : f32 to vector<1x128xf32>
    %46 = vector.extract_strided_slice %37 {offsets = [2, 0], sizes = [1, 128], strides = [1, 1]} : vector<4x128xf32> to vector<1x128xf32>
    %47 = arith.cmpf oeq, %46, %44 : vector<1x128xf32>
    %cst_15 = arith.constant 2.000000e+00 : f32
    %48 = vector.broadcast %cst_15 : f32 to vector<1x128xf32>
    %49 = arith.select %47, %48, %45 : vector<1x128xi1>, vector<1x128xf32>
    %50 = vector.extract_strided_slice %37 {offsets = [1, 0], sizes = [1, 128], strides = [1, 1]} : vector<4x128xf32> to vector<1x128xf32>
    %51 = arith.cmpf oeq, %50, %44 : vector<1x128xf32>
    %cst_16 = arith.constant 1.000000e+00 : f32
    %52 = vector.broadcast %cst_16 : f32 to vector<1x128xf32>
    %53 = arith.select %51, %52, %49 : vector<1x128xi1>, vector<1x128xf32>
    %54 = vector.extract_strided_slice %37 {offsets = [0, 0], sizes = [1, 128], strides = [1, 1]} : vector<4x128xf32> to vector<1x128xf32>
    %55 = arith.cmpf oeq, %54, %44 : vector<1x128xf32>
    %cst_17 = arith.constant 0.000000e+00 : f32
    %56 = vector.broadcast %cst_17 : f32 to vector<1x128xf32>
    %57 = arith.select %55, %56, %53 : vector<1x128xi1>, vector<1x128xf32>
    %c0_18 = arith.constant 0 : index
    %c0_19 = arith.constant 0 : index
    %58 = vector.load %arg1[%c0_18, %c0_19] : memref<8x128xf32, #tpu.memory_space<vmem>>, vector<1x128xf32>
    %c1 = arith.constant 1 : index
    %c0_20 = arith.constant 0 : index
    %59 = vector.load %arg1[%c1, %c0_20] : memref<8x128xf32, #tpu.memory_space<vmem>>, vector<1x128xf32>
    %c2 = arith.constant 2 : index
    %c0_21 = arith.constant 0 : index
    %60 = vector.load %arg1[%c2, %c0_21] : memref<8x128xf32, #tpu.memory_space<vmem>>, vector<1x128xf32>
    %61 = vector.extract_strided_slice %31 {offsets = [0, 0], sizes = [1, 128], strides = [1, 1]} : vector<4x128xf32> to vector<1x128xf32>
    %62 = arith.mulf %61, %60 : vector<1x128xf32>
    %63 = arith.subf %58, %62 : vector<1x128xf32>
    %cst_22 = arith.constant 0.000000e+00 : f32
    %cst_23 = arith.constant 3.200000e+01 : f32
    %64 = vector.broadcast %cst_22 : f32 to vector<1x128xf32>
    %65 = arith.maximumf %64, %63 : vector<1x128xf32>
    %66 = vector.broadcast %cst_23 : f32 to vector<1x128xf32>
    %67 = arith.minimumf %66, %65 : vector<1x128xf32>
    %68 = vector.extract_strided_slice %31 {offsets = [1, 0], sizes = [1, 128], strides = [1, 1]} : vector<4x128xf32> to vector<1x128xf32>
    %69 = arith.mulf %68, %60 : vector<1x128xf32>
    %70 = arith.subf %59, %69 : vector<1x128xf32>
    %cst_24 = arith.constant 0.000000e+00 : f32
    %cst_25 = arith.constant 3.200000e+01 : f32
    %71 = vector.broadcast %cst_24 : f32 to vector<1x128xf32>
    %72 = arith.maximumf %71, %70 : vector<1x128xf32>
    %73 = vector.broadcast %cst_25 : f32 to vector<1x128xf32>
    %74 = arith.minimumf %73, %72 : vector<1x128xf32>
    %75 = vector.extract_strided_slice %31 {offsets = [2, 0], sizes = [1, 128], strides = [1, 1]} : vector<4x128xf32> to vector<1x128xf32>
    %76 = arith.mulf %75, %60 : vector<1x128xf32>
    %77 = arith.addf %58, %76 : vector<1x128xf32>
    %cst_26 = arith.constant 0.000000e+00 : f32
    %cst_27 = arith.constant 3.200000e+01 : f32
    %78 = vector.broadcast %cst_26 : f32 to vector<1x128xf32>
    %79 = arith.maximumf %78, %77 : vector<1x128xf32>
    %80 = vector.broadcast %cst_27 : f32 to vector<1x128xf32>
    %81 = arith.minimumf %80, %79 : vector<1x128xf32>
    %82 = vector.extract_strided_slice %31 {offsets = [3, 0], sizes = [1, 128], strides = [1, 1]} : vector<4x128xf32> to vector<1x128xf32>
    %83 = arith.mulf %82, %60 : vector<1x128xf32>
    %84 = arith.addf %59, %83 : vector<1x128xf32>
    %cst_28 = arith.constant 0.000000e+00 : f32
    %cst_29 = arith.constant 3.200000e+01 : f32
    %85 = vector.broadcast %cst_28 : f32 to vector<1x128xf32>
    %86 = arith.maximumf %85, %84 : vector<1x128xf32>
    %87 = vector.broadcast %cst_29 : f32 to vector<1x128xf32>
    %88 = arith.minimumf %87, %86 : vector<1x128xf32>
    %cst_30 = arith.constant 0.000000e+00 : f32
    %89 = vector.broadcast %cst_30 : f32 to vector<1x128xf32>
    %90 = tpu.concatenate %67, %74, %81, %88, %44, %57, %89, %89 in 0 : vector<1x128xf32>, vector<1x128xf32>, vector<1x128xf32>, vector<1x128xf32>, vector<1x128xf32>, vector<1x128xf32>, vector<1x128xf32>, vector<1x128xf32> -> vector<8x128xf32>
    %c0_31 = arith.constant 0 : index
    %c0_32 = arith.constant 0 : index
    %91 = vector.load %arg6[%c0_31, %c0_32] : memref<8x128xf32, #tpu.memory_space<vmem>>, vector<8x128xf32>
    tpu.vector_store %arg6[%c0_31, %c0_32], %90 {strides = array<i32>} : memref<8x128xf32, #tpu.memory_space<vmem>>, vector<8x128xf32>,
    return
  }
}

</mosaic_0001>

<llo_original>
// kernel: tile.38
$region0: #{tile.38}
  #allocation0 [shape = 's32[1]{0}', space=sflag, size = 0x4, scoped, tag = 'scoped memory for tile.38']
  %s0 = inlined_call_operand.vmem [shape: f32[16], index: 0, kind: input, shape index: {}]
  %s1 = inlined_call_operand.vmem [shape: f32[2,16], index: 1, kind: output, shape index: {}]
  // Predicated region
  $region2: #{tile.38} parent=0 // pred_check
    _
  $region3: #{tile.38} parent=0 // pred_check_branch
    %3 = sbr.rel (0) target = $region5
  $region4: #{tile.38} parent=0 // pred_region
    _
  $region5: #{tile.38} parent=0 // pred_fallthru
    _
  %v4 = vld [vmem:[%s0] ss:$0 sm:$0xff]
  %5 = vst [vmem:[%s1] sm:$0x3] %v4

// kernel: tile.39
$region0: #{tile.39}
  %s0 = inlined_call_operand.vmem [shape: f32[2,16], index: 0, kind: input, shape index: {}]
  %s1 = inlined_call_operand.vmem [shape: f32[32], index: 1, kind: output, shape index: {}]
  $region1: #{tile.39} parent=0
    #allocation0 [shape = 'u8[4096]{0}', space=vmem, size = 0x1000, scoped, tag = 'scoped mem for output reshape']
    #allocation1 [shape = 'u8[4096]{0}', space=vmem, size = 0x1000, scoped, tag = 'scoped mem for input reshape']
    %s3 = sshllo.u32 0, 2
    %v4 = vld [vmem:[%s0] sm:%s3]
    %5 = vst [vmem:[#allocation1] sm:%s3] %v4
    %v6 = vld [vmem:[#allocation1] sm:$0x1]
    %vm7 = vcmask 130048
    %8 = vst.msk [vmem:[#allocation0] sm:$0x1] %vm7, %v6
    %s9 = scalar_lea.vmem [#allocation1], 1
    %v10 = vld [vmem:[%s9] sm:$0x1]
    %11 = vrot.lane.b32.xlu0 %v10, 16
    %v12 = vpop.permute.xlu0 %11
    %vm13 = vcmask 261248
    %14 = vst.msk [vmem:[#allocation0] sm:$0x1] %vm13, %v12
    %s16 = sshllo.u32 0, 1
    %v18 = vld [vmem:[#allocation0] sm:%s16]
    %s19 = sshllo.u32 0, 1
    %20 = vst [vmem:[%s1] sm:%s19] %v18

// kernel: tile.53
$region0: #{tile.53}
  #allocation0 [shape = 's32[1]{0}', space=sflag, size = 0x4, scoped, tag = 'scoped memory for tile.53']
  %s0 = inlined_call_operand.vmem [shape: f32[4], index: 0, kind: input, shape index: {}]
  %s1 = inlined_call_operand.vmem [shape: f32[2,4], index: 1, kind: output, shape index: {}]
  // Predicated region
  $region2: #{tile.53} parent=0 // pred_check
    _
  $region3: #{tile.53} parent=0 // pred_check_branch
    %3 = sbr.rel (0) target = $region5
  $region4: #{tile.53} parent=0 // pred_region
    _
  $region5: #{tile.53} parent=0 // pred_fallthru
    _
  %v4 = vld [vmem:[%s0] ss:$0 sm:$0xff]
  %5 = vst [vmem:[%s1] sm:$0x3] %v4

// kernel: tile.54
$region0: #{tile.54}
  %s0 = inlined_call_operand.vmem [shape: f32[2,4], index: 0, kind: input, shape index: {}]
  %s1 = inlined_call_operand.vmem [shape: f32[8], index: 1, kind: output, shape index: {}]
  $region1: #{tile.54} parent=0
    #allocation0 [shape = 'u8[4096]{0}', space=vmem, size = 0x1000, scoped, tag = 'scoped mem for output reshape']
    #allocation1 [shape = 'u8[4096]{0}', space=vmem, size = 0x1000, scoped, tag = 'scoped mem for input reshape']
    %s3 = sshllo.u32 0, 2
    %v4 = vld [vmem:[%s0] sm:%s3]
    %5 = vst [vmem:[#allocation1] sm:%s3] %v4
    %v6 = vld [vmem:[#allocation1] sm:$0x1]
    %vm7 = vcmask 31744
    %8 = vst.msk [vmem:[#allocation0] sm:$0x1] %vm7, %v6
    %s9 = scalar_lea.vmem [#allocation1], 1
    %v10 = vld [vmem:[%s9] sm:$0x1]
    %11 = vrot.lane.b32.xlu0 %v10, 4
    %v12 = vpop.permute.xlu0 %11
    %vm13 = vcmask 64544
    %14 = vst.msk [vmem:[#allocation0] sm:$0x1] %vm13, %v12
    %s16 = sshllo.u32 0, 1
    %v18 = vld [vmem:[#allocation0] sm:%s16]
    %s19 = sshllo.u32 0, 1
    %20 = vst [vmem:[%s1] sm:%s19] %v18

// kernel: rtmdet_onnx_forward.1
$region0: #{rtmdet_onnx_forward.1}
  #allocation0 [shape = 'u32[]', space=smem, size = 0x4, offset = 0x4, fixed_abs, tag = 'smem constant byte address 0x4 - core index']
  #allocation1 [shape = 'u32[144,128]{1,0:T(1,128)}', space=vmem, size = 0x12000, scoped, tag = 'internal scratch']
  %s0 = inlined_call_operand.vmem [shape: bf16[8,128], index: 0, kind: input, shape index: {}]
  %s1 = inlined_call_operand.vmem [shape: f32[8,128], index: 1, kind: input, shape index: {}]
  %s2 = inlined_call_operand.vmem [shape: bf16[96,8], index: 2, kind: input, shape index: {}]
  %s3 = inlined_call_operand.vmem [shape: f32[96,1], index: 3, kind: input, shape index: {}]
  %s4 = inlined_call_operand.vmem [shape: bf16[24,96], index: 4, kind: input, shape index: {}]
  %s5 = inlined_call_operand.vmem [shape: f32[24,1], index: 5, kind: input, shape index: {}]
  %s6 = inlined_call_operand.vmem [shape: f32[8,128], index: 6, kind: output, shape index: {}]
  %s7 = sld [smem:[#allocation0]]
  $region34: #{rtmdet_onnx_forward.1} parent=0
    _
  %s9 = ssub.s32 1, %s7
  %s10 = scalar_select 0, %s9, %s7
  // Predicated region
  $region2: #{rtmdet_onnx_forward.1} parent=0 // pred_check
    _
  $region3: #{rtmdet_onnx_forward.1} parent=0 // pred_check_branch
    %12 = sbr.rel (0) target = $region5
  $region4: #{rtmdet_onnx_forward.1} parent=0 // pred_region
    _
  $region5: #{rtmdet_onnx_forward.1} parent=0 // pred_fallthru
    _
  // Predicated region
  $region6: #{rtmdet_onnx_forward.1} parent=0 // pred_check
    _
  $region7: #{rtmdet_onnx_forward.1} parent=0 // pred_check_branch
    %14 = sbr.rel (0) target = $region9
  $region8: #{rtmdet_onnx_forward.1} parent=0 // pred_region
    _
  $region9: #{rtmdet_onnx_forward.1} parent=0 // pred_fallthru
    _
  // Predicated region
  $region10: #{rtmdet_onnx_forward.1} parent=0 // pred_check
    _
  $region11: #{rtmdet_onnx_forward.1} parent=0 // pred_check_branch
    %16 = sbr.rel (0) target = $region13
  $region12: #{rtmdet_onnx_forward.1} parent=0 // pred_region
    _
  $region13: #{rtmdet_onnx_forward.1} parent=0 // pred_fallthru
    _
  // Predicated region
  $region14: #{rtmdet_onnx_forward.1} parent=0 // pred_check
    _
  $region15: #{rtmdet_onnx_forward.1} parent=0 // pred_check_branch
    %18 = sbr.rel (0) target = $region17
  $region16: #{rtmdet_onnx_forward.1} parent=0 // pred_region
    _
  $region17: #{rtmdet_onnx_forward.1} parent=0 // pred_fallthru
    _
  // Predicated region
  $region18: #{rtmdet_onnx_forward.1} parent=0 // pred_check
    _
  $region19: #{rtmdet_onnx_forward.1} parent=0 // pred_check_branch
    %20 = sbr.rel (0) target = $region21
  $region20: #{rtmdet_onnx_forward.1} parent=0 // pred_region
    _
  $region21: #{rtmdet_onnx_forward.1} parent=0 // pred_fallthru
    _
  // Predicated region
  $region22: #{rtmdet_onnx_forward.1} parent=0 // pred_check
    _
  $region23: #{rtmdet_onnx_forward.1} parent=0 // pred_check_branch
    %22 = sbr.rel (0) target = $region25
  $region24: #{rtmdet_onnx_forward.1} parent=0 // pred_region
    _
  $region25: #{rtmdet_onnx_forward.1} parent=0 // pred_fallthru
    _
  %v24 = vld [vmem:[%s0] sm:$0xf]
  %v25 = vld [vmem:[%s2] sm:$0xf]
  %v26 = vld [vmem:[%s2 + $0x4] sm:$0xf]
  %v27 = vld [vmem:[%s2 + $0x8] sm:$0xf]
  %v28 = vld [vmem:[%s2 + $0xc] sm:$0xf]
  %v29 = vld [vmem:[%s2 + $0x10] sm:$0xf]
  %v30 = vld [vmem:[%s2 + $0x14] sm:$0xf]
  %v31 = vld [vmem:[%s2 + $0x18] sm:$0xf]
  %v32 = vld [vmem:[%s2 + $0x1c] sm:$0xf]
  %v33 = vld [vmem:[%s2 + $0x20] sm:$0xf]
  %v34 = vld [vmem:[%s2 + $0x24] sm:$0xf]
  %v35 = vld [vmem:[%s2 + $0x28] sm:$0xf]
  %v36 = vld [vmem:[%s2 + $0x2c] sm:$0xf]
  %v37 = vld [vmem:[%s3] sm:$0xff]
  %v38 = vld [vmem:[%s3 + $0x8] sm:$0xff]
  %v39 = vld [vmem:[%s3 + $0x10] sm:$0xff]
  %v40 = vld [vmem:[%s3 + $0x18] sm:$0xff]
  %v41 = vld [vmem:[%s3 + $0x20] sm:$0xff]
  %v42 = vld [vmem:[%s3 + $0x28] sm:$0xff]
  %v43 = vld [vmem:[%s3 + $0x30] sm:$0xff]
  %v44 = vld [vmem:[%s3 + $0x38] sm:$0xff]
  %v45 = vld [vmem:[%s3 + $0x40] sm:$0xff]
  %v46 = vld [vmem:[%s3 + $0x48] sm:$0xff]
  %v47 = vld [vmem:[%s3 + $0x50] sm:$0xff]
  %v48 = vld [vmem:[%s3 + $0x58] sm:$0xff]
  %50 = vset.pattern.permute.xlu0 0
  %51 = vperm.xlu0 %50, %v37
  %v52 = vpop.permute.xlu0 %51
  %55 = vset.pattern.permute.xlu0 0
  %56 = vperm.xlu0 %55, %v38
  %v57 = vpop.permute.xlu0 %56
  %60 = vset.pattern.permute.xlu0 0
  %61 = vperm.xlu0 %60, %v39
  %v62 = vpop.permute.xlu0 %61
  %65 = vset.pattern.permute.xlu0 0
  %66 = vperm.xlu0 %65, %v40
  %v67 = vpop.permute.xlu0 %66
  %70 = vset.pattern.permute.xlu0 0
  %71 = vperm.xlu0 %70, %v41
  %v72 = vpop.permute.xlu0 %71
  %75 = vset.pattern.permute.xlu0 0
  %76 = vperm.xlu0 %75, %v42
  %v77 = vpop.permute.xlu0 %76
  %80 = vset.pattern.permute.xlu0 0
  %81 = vperm.xlu0 %80, %v43
  %v82 = vpop.permute.xlu0 %81
  %85 = vset.pattern.permute.xlu0 0
  %86 = vperm.xlu0 %85, %v44
  %v87 = vpop.permute.xlu0 %86
  %90 = vset.pattern.permute.xlu0 0
  %91 = vperm.xlu0 %90, %v45
  %v92 = vpop.permute.xlu0 %91
  %95 = vset.pattern.permute.xlu0 0
  %96 = vperm.xlu0 %95, %v46
  %v97 = vpop.permute.xlu0 %96
  %100 = vset.pattern.permute.xlu0 0
  %101 = vperm.xlu0 %100, %v47
  %v102 = vpop.permute.xlu0 %101
  %105 = vset.pattern.permute.xlu0 0
  %106 = vperm.xlu0 %105, %v48
  %v107 = vpop.permute.xlu0 %106
  %v121 = vunpack.c.l.b16 %v25
  %v122 = vunpack.c.l.b16 %v26
  %v123 = vunpack.c.l.b16 %v27
  %v124 = vunpack.c.l.b16 %v28
  %v125 = vunpack.c.l.b16 %v29
  %v126 = vunpack.c.l.b16 %v30
  %v127 = vunpack.c.l.b16 %v31
  %v128 = vunpack.c.l.b16 %v32
  %v129 = vunpack.c.l.b16 %v33
  %v130 = vunpack.c.l.b16 %v34
  %v131 = vunpack.c.l.b16 %v35
  %v132 = vunpack.c.l.b16 %v36
  %v133 = vpack.c.b16 %v122, %v121
  %v134 = vpack.c.b16 %v124, %v123
  %v135 = vpack.c.b16 %v126, %v125
  %v136 = vpack.c.b16 %v128, %v127
  %v137 = vpack.c.b16 %v130, %v129
  %v138 = vpack.c.b16 %v132, %v131
  %vm139 = vcmask 64512
  %v141 = vsel %vm139, %v133, 0
  %v144 = vsel %vm139, %v134, 0
  %v147 = vsel %vm139, %v135, 0
  %v150 = vsel %vm139, %v136, 0
  %v153 = vsel %vm139, %v137, 0
  %v156 = vsel %vm139, %v138, 0
  %vm158 = vcmask 1043456
  %v160 = vsel %vm158, %v24, 0
  %162 = vmatprep.subr.bf16.mxu0 0
  %163 = vmatpush1.bf16.msra.mxu0 %v160
  %164 = vmatprep.subr.bf16.mxu0 0
  %165 = vmatpush1.bf16.msra.mxu0 0
  %166 = vmatprep.subr.bf16.mxu0 0
  %167 = vmatpush1.bf16.msra.mxu0 0
  %168 = vmatprep.subr.bf16.mxu0 0
  %169 = vmatpush1.bf16.msra.mxu0 0
  %170 = vmatprep.subr.bf16.mxu0 0
  %171 = vmatpush1.bf16.msra.mxu0 0
  %172 = vmatprep.subr.bf16.mxu0 0
  %173 = vmatpush1.bf16.msra.mxu0 0
  %174 = vmatprep.subr.bf16.mxu0 0
  %175 = vmatpush1.bf16.msra.mxu0 0
  %176 = vmatprep.subr.bf16.mxu0 0
  %177 = vmatpush1.bf16.msra.mxu0 0
  %178 = vmatprep.subr.bf16.mxu0 0
  %179 = vmatpush1.bf16.msra.mxu0 0
  %180 = vmatprep.subr.bf16.mxu0 0
  %181 = vmatpush1.bf16.msra.mxu0 0
  %182 = vmatprep.subr.bf16.mxu0 0
  %183 = vmatpush1.bf16.msra.mxu0 0
  %184 = vmatprep.subr.bf16.mxu0 0
  %185 = vmatpush1.bf16.msra.mxu0 0
  %186 = vmatprep.subr.bf16.mxu0 0
  %187 = vmatpush1.bf16.msra.mxu0 0
  %188 = vmatprep.subr.bf16.mxu0 0
  %189 = vmatpush1.bf16.msra.mxu0 0
  %190 = vmatprep.subr.bf16.mxu0 0
  %191 = vmatpush1.bf16.msra.mxu0 0
  %192 = vmatprep.subr.bf16.mxu0 0
  %193 = vmatpush1.bf16.msra.mxu0 0
  %194 = vmatprep.mubr.bf16.mxu0 0
  %195 = vmatmul.mubr.bf16.gmra.mrb[0].mxu0 %v141
  %v196 = vpop.f32.mrb[0].mxu0
  %v197 = vadd.f32 %v52, %v196
  %v198 = vpop.f32.mrb[0].mxu0
  %v199 = vpop.f32.mrb[0].mxu0
  %v200 = vadd.f32 %v57, %v199
  %v201 = vpop.f32.mrb[0].mxu0
  %202 = vmatprep.mubr.bf16.mxu0 0
  %203 = vmatmul.mubr.bf16.gmra.mrb[0].mxu0 %v144
  %v204 = vpop.f32.mrb[0].mxu0
  %v205 = vadd.f32 %v62, %v204
  %v206 = vpop.f32.mrb[0].mxu0
  %v207 = vpop.f32.mrb[0].mxu0
  %v208 = vadd.f32 %v67, %v207
  %v209 = vpop.f32.mrb[0].mxu0
  %210 = vmatprep.mubr.bf16.mxu0 0
  %211 = vmatmul.mubr.bf16.gmra.mrb[0].mxu0 %v147
  %v212 = vpop.f32.mrb[0].mxu0
  %v213 = vadd.f32 %v72, %v212
  %v214 = vpop.f32.mrb[0].mxu0
  %v215 = vpop.f32.mrb[0].mxu0
  %v216 = vadd.f32 %v77, %v215
  %v217 = vpop.f32.mrb[0].mxu0
  %218 = vmatprep.mubr.bf16.mxu0 0
  %219 = vmatmul.mubr.bf16.gmra.mrb[0].mxu0 %v150
  %v220 = vpop.f32.mrb[0].mxu0
  %v221 = vadd.f32 %v82, %v220
  %v222 = vpop.f32.mrb[0].mxu0
  %v223 = vpop.f32.mrb[0].mxu0
  %v224 = vadd.f32 %v87, %v223
  %v225 = vpop.f32.mrb[0].mxu0
  %226 = vmatprep.mubr.bf16.mxu0 0
  %227 = vmatmul.mubr.bf16.gmra.mrb[0].mxu0 %v153
  %v228 = vpop.f32.mrb[0].mxu0
  %v229 = vadd.f32 %v92, %v228
  %v230 = vpop.f32.mrb[0].mxu0
  %v231 = vpop.f32.mrb[0].mxu0
  %v232 = vadd.f32 %v97, %v231
  %v233 = vpop.f32.mrb[0].mxu0
  %234 = vmatprep.mubr.bf16.mxu0 0
  %235 = vmatmul.mubr.bf16.gmra.mrb[0].mxu0 %v156
  %v236 = vpop.f32.mrb[0].mxu0
  %v237 = vadd.f32 %v102, %v236
  %v238 = vpop.f32.mrb[0].mxu0
  %v239 = vpop.f32.mrb[0].mxu0
  %v240 = vadd.f32 %v107, %v239
  %v241 = vpop.f32.mrb[0].mxu0
  %242 = vdwg.mxu0
  %v243 = vmax.f32 %v197, 0.0
  %v244 = vmax.f32 %v200, 0.0
  %v245 = vmax.f32 %v205, 0.0
  %v246 = vmax.f32 %v208, 0.0
  %v247 = vmax.f32 %v213, 0.0
  %v248 = vmax.f32 %v216, 0.0
  %v249 = vmax.f32 %v221, 0.0
  %v250 = vmax.f32 %v224, 0.0
  %v251 = vmax.f32 %v229, 0.0
  %v252 = vmax.f32 %v232, 0.0
  %v253 = vmax.f32 %v237, 0.0
  %v254 = vmax.f32 %v240, 0.0
  %v255 = vld [vmem:[%s4] sm:$0xf]
  %v256 = vld [vmem:[%s4 + $0x4] sm:$0xf]
  %v257 = vld [vmem:[%s4 + $0x8] sm:$0xf]
  %v258 = vpack.c.bf16 %v244, %v243
  %v259 = vpack.c.bf16 %v246, %v245
  %v260 = vpack.c.bf16 %v248, %v247
  %v261 = vpack.c.bf16 %v250, %v249
  %v262 = vpack.c.bf16 %v252, %v251
  %v263 = vpack.c.bf16 %v254, %v253
  %v264 = vld [vmem:[%s5] sm:$0xff]
  %v265 = vld [vmem:[%s5 + $0x8] sm:$0xff]
  %v266 = vld [vmem:[%s5 + $0x10] sm:$0xff]
  %268 = vset.pattern.permute.xlu0 0
  %269 = vperm.xlu0 %268, %v264
  %v270 = vpop.permute.xlu0 %269
  %273 = vset.pattern.permute.xlu0 0
  %274 = vperm.xlu0 %273, %v265
  %v275 = vpop.permute.xlu0 %274
  %278 = vset.pattern.permute.xlu0 0
  %279 = vperm.xlu0 %278, %v266
  %v280 = vpop.permute.xlu0 %279
  %v285 = vunpack.c.l.b16 %v255
  %v286 = vunpack.c.l.b16 %v256
  %v287 = vunpack.c.l.b16 %v257
  %v288 = vpack.c.b16 %v286, %v285
  %v289 = vpack.c.b16 %v287, %v287
  %vm290 = vcmask 785408
  %v292 = vsel %vm290, %v288, 0
  %v295 = vsel %vm290, %v289, 0
  %297 = vmatprep.subr.bf16.mxu0 0
  %298 = vmatpush1.bf16.msra.mxu0 %v258
  %299 = vmatprep.subr.bf16.mxu0 0
  %300 = vmatpush1.bf16.msra.mxu0 %v259
  %301 = vmatprep.subr.bf16.mxu0 0
  %302 = vmatpush1.bf16.msra.mxu0 %v260
  %303 = vmatprep.subr.bf16.mxu0 0
  %304 = vmatpush1.bf16.msra.mxu0 %v261
  %305 = vmatprep.subr.bf16.mxu0 0
  %306 = vmatpush1.bf16.msra.mxu0 %v262
  %307 = vmatprep.subr.bf16.mxu0 0
  %308 = vmatpush1.bf16.msra.mxu0 %v263
  %309 = vmatprep.subr.bf16.mxu0 0
  %310 = vmatpush1.bf16.msra.mxu0 0
  %311 = vmatprep.subr.bf16.mxu0 0
  %312 = vmatpush1.bf16.msra.mxu0 0
  %313 = vmatprep.subr.bf16.mxu0 0
  %314 = vmatpush1.bf16.msra.mxu0 0
  %315 = vmatprep.subr.bf16.mxu0 0
  %316 = vmatpush1.bf16.msra.mxu0 0
  %317 = vmatprep.subr.bf16.mxu0 0
  %318 = vmatpush1.bf16.msra.mxu0 0
  %319 = vmatprep.subr.bf16.mxu0 0
  %320 = vmatpush1.bf16.msra.mxu0 0
  %321 = vmatprep.subr.bf16.mxu0 0
  %322 = vmatpush1.bf16.msra.mxu0 0
  %323 = vmatprep.subr.bf16.mxu0 0
  %324 = vmatpush1.bf16.msra.mxu0 0
  %325 = vmatprep.subr.bf16.mxu0 0
  %326 = vmatpush1.bf16.msra.mxu0 0
  %327 = vmatprep.subr.bf16.mxu0 0
  %328 = vmatpush1.bf16.msra.mxu0 0
  %329 = vmatprep.mubr.bf16.mxu0 0
  %330 = vmatmul.mubr.bf16.gmra.mrb[0].mxu0 %v292
  %v331 = vpop.f32.mrb[0].mxu0
  %v332 = vadd.f32 %v270, %v331
  %v333 = vpop.f32.mrb[0].mxu0
  %v334 = vpop.f32.mrb[0].mxu0
  %v335 = vadd.f32 %v275, %v334
  %v336 = vpop.f32.mrb[0].mxu0
  %337 = vmatprep.mubr.bf16.mxu0 0
  %338 = vmatmul.mubr.bf16.gmra.mrb[0].mxu0 %v295
  %v339 = vpop.f32.mrb[0].mxu0
  %v340 = vadd.f32 %v280, %v339
  %v341 = vpop.f32.mrb[0].mxu0
  %v342 = vpop.f32.mrb[0].mxu0
  %v343 = vpop.f32.mrb[0].mxu0
  %344 = vdwg.mxu0
  %v345 = vlaneseq
  %v346 = vand.u32 %v345, 127
  %vm347 = vcmp.ge.s32.totalorder %v346, 32
  %v348 = vsel %vm347, 1, 0
  %vm349 = vcmp.eq.s32.totalorder %v348, 1
  %v350 = vsel %vm349, %v335, %v332
  %vm351 = vcmp.ge.s32.totalorder %v346, 40
  %v352 = vsel %vm351, 1, 0
  %vm353 = vcmp.eq.s32.totalorder %v352, 1
  %v354 = vsel %vm353, %v340, %v350
  %v355 = vmax.f32 %v354, 0.0
  %v356 = vsub.f32 0.0, %v354
  %v357 = vmul.f32 %v356, 1.442695
  %v358 = vpow.pop %v357
  %v359 = vadd.f32 %v358, 1.0
  %v360 = vrcp.pop %v359
  %v362 = vrot.slane %v360, 1
  %v364 = vmax.f32 %v360, %v362
  %v365 = vrot.slane %v360, 2
  %v367 = vmax.f32 %v364, %v365
  %v368 = vrot.slane %v360, 3
  %v370 = vmax.f32 %v367, %v368
  %v372 = vrot.slane %v370, 6
  %vm374 = vcmp.eq.f32.partialorder %v360, %v372
  %v375 = vsel %vm374, 2.0, 3.0
  %v376 = vrot.slane %v370, 7
  %vm378 = vcmp.eq.f32.partialorder %v360, %v376
  %v380 = vrot.slane %v375, 1
  %v382 = vsel %vm378, 1.0, %v380
  %vm383 = vcmp.eq.f32.partialorder %v360, %v370
  %v385 = vrot.slane %v382, 1
  %v387 = vsel %vm383, 0.0, %v385
  %v388 = vld [vmem:[%s1] sm:$0x1]
  %v389 = vld [vmem:[%s1 + $0x1] sm:$0x1]
  %v390 = vld [vmem:[%s1 + $0x2] sm:$0x1]
  %v392 = vrot.slane %v390, 4
  %v394 = vmul.f32 %v355, %v392
  %v396 = vrot.slane %v394, 4
  %v398 = vsub.f32 %v388, %v396
  %v399 = vmax.f32 %v398, 0.0
  %v400 = vmin.f32 %v399, 32.0
  %v401 = vrot.slane %v390, 3
  %v403 = vmul.f32 %v355, %v401
  %v405 = vrot.slane %v403, 5
  %v407 = vsub.f32 %v389, %v405
  %v408 = vmax.f32 %v407, 0.0
  %v409 = vmin.f32 %v408, 32.0
  %v410 = vrot.slane %v390, 2
  %v412 = vmul.f32 %v355, %v410
  %v414 = vrot.slane %v412, 6
  %v416 = vadd.f32 %v388, %v414
  %v417 = vmax.f32 %v416, 0.0
  %v418 = vmin.f32 %v417, 32.0
  %v419 = vrot.slane %v390, 1
  %v421 = vmul.f32 %v355, %v419
  %v423 = vrot.slane %v421, 7
  %v425 = vadd.f32 %v389, %v423
  %v426 = vmax.f32 %v425, 0.0
  %v427 = vmin.f32 %v426, 32.0
  %v429 = vrot.slane %v409, 7
  %v432 = vrot.slane %v418, 6
  %v435 = vrot.slane %v427, 5
  %v437 = vrot.slane %v370, 4
  %v440 = vrot.slane %v387, 3
  %vm442 = vcmask 1040384
  %v443 = vsel %vm442, %v400, %v429
  %vm444 = vcmask 1041408
  %v445 = vsel %vm444, %v443, %v432
  %vm446 = vcmask 1042432
  %v447 = vsel %vm446, %v445, %v435
  %v448 = vsel %vm158, %v447, %v437
  %vm449 = vcmask 1044480
  %v450 = vsel %vm449, %v448, %v440
  %vm451 = vcmask 1045504
  %v452 = vsel %vm451, %v450, 0.0
  %vm453 = vcmask 1046528
  %v454 = vsel %vm453, %v452, 0.0
  %455 = vst [vmem:[%s6] sm:$0xff] %v454
  // Predicated region
  $region26: #{rtmdet_onnx_forward.1} parent=0 // pred_check
    _
  $region27: #{rtmdet_onnx_forward.1} parent=0 // pred_check_branch
    %457 = sbr.rel (0) target = $region29
  $region28: #{rtmdet_onnx_forward.1} parent=0 // pred_region
    _
  $region29: #{rtmdet_onnx_forward.1} parent=0 // pred_fallthru
    _
  // Predicated region
  $region30: #{rtmdet_onnx_forward.1} parent=0 // pred_check
    _
  $region31: #{rtmdet_onnx_forward.1} parent=0 // pred_check_branch
    %459 = sbr.rel (0) target = $region33
  $region32: #{rtmdet_onnx_forward.1} parent=0 // pred_region
    _
  $region33: #{rtmdet_onnx_forward.1} parent=0 // pred_fallthru
    _

</llo_original>
